<compile_context>
chip_gen: v5e
topology: v5e:2x2
jax: 0.10.0
libtpu: 0.0.40
codegen_flags: <defaults>
</compile_context>

<pallas_src>
import functools

import jax
import jax.numpy as jnp
from jax import lax
from jax.experimental import pallas as pl
from jax.experimental.pallas import tpu as pltpu


def _is_pow2(v: int) -> bool:
    return v > 0 and (v & (v - 1)) == 0


def _outblock_kernel(x_ref, w_ref, b_ref, o_ref, *, cb, cout, h, w):
    # x_ref : (WS, N*H*W)     bf16  channels zero-padded to WS; lane = n*HW + i*W + j
    # w_ref : (9*cb+cout, WS) f32   rows [t*cb:(t+1)*cb] = conv1 tap t=(ky*3+kx)
    #                               rows [9*cb:9*cb+cout] = conv2 (1x1) weights
    # b_ref : (cb+cout, 1)    f32   [b1; b2] as a column
    # o_ref : (cout, N*H*W)   f32   lane-dense output, same lane order as input
    nhw = x_ref.shape[1]
    x = x_ref[...].astype(jnp.float32)          # widen once; rolls/masks in f32 layout

    # Per-pixel (row, col) within its image, along the flat lane axis.
    pos = lax.broadcasted_iota(jnp.int32, (1, nhw), 1)
    if _is_pow2(w) and _is_pow2(h):
        col = jnp.bitwise_and(pos, w - 1)
        row = jnp.bitwise_and(pos >> (w.bit_length() - 1), h - 1)
    else:
        q = pos % (h * w)
        row = q // w
        col = q % w

    # conv1 (3x3, SAME): 9 taps = roll on the lane axis + zero-padding masks,
    # each contracted against its (cb, WS) weight block on the MXU.
    acc = jnp.zeros((cb, nhw), jnp.float32)
    t = 0
    for oy in (-1, 0, 1):
        for ox in (-1, 0, 1):
            shift = (-(oy * w + ox)) % nhw           # tap[p] = x[p + oy*w + ox]
            tap = pltpu.roll(x, shift=shift, axis=1) if shift else x
            mask = None
            if oy != 0:
                mask = (row + oy >= 0) & (row + oy < h)
            if ox != 0:
                cm = (col + ox >= 0) & (col + ox < w)
                mask = cm if mask is None else jnp.logical_and(mask, cm)
            if mask is not None:
                tap = jnp.where(mask, tap, 0.0)      # SAME-padding zeros (also kills wrap)
            w_t = w_ref[pl.ds(t * cb, cb), :].astype(jnp.bfloat16)     # (cb, WS)
            acc = acc + jnp.dot(w_t, tap.astype(jnp.bfloat16),
                                preferred_element_type=jnp.float32)
            t += 1

    b1 = b_ref[pl.ds(0, cb), :]                      # (cb, 1) f32
    hidden = jnp.maximum(acc + b1, 0.0)              # bias + ReLU in f32

    # conv2 (1x1): one more MXU matmul over channels.
    w2 = w_ref[pl.ds(9 * cb, cout), :][:, :cb].astype(jnp.bfloat16)    # (cout, cb)
    b2 = b_ref[pl.ds(cb, cout), :]                   # (cout, 1) f32
    out = jnp.dot(w2, hidden.astype(jnp.bfloat16),
                  preferred_element_type=jnp.float32) + b2
    o_ref[...] = out.astype(o_ref.dtype)


@jax.jit
def out_block_pallas(x_nchw, w1_oihw, b1, w2_oihw, b2):
    """Forward pass of OutBlock. x_nchw: (N, Cin, H, W) f32 -> (N, Cout, H, W) f32."""
    N, Cin, H, W = x_nchw.shape
    Cb = w1_oihw.shape[0]
    Cout = w2_oihw.shape[0]
    HW = H * W
    NHW = N * HW
    WS = max(Cin, Cb)     # shared contraction width for the packed weight slab

    # Activations: (N,Cin,H,W) -> (WS, N*HW) bf16, channels zero-padded to WS.
    x_flat = jnp.transpose(x_nchw, (1, 0, 2, 3)).reshape(Cin, NHW)
    if WS > Cin:
        x_flat = jnp.pad(x_flat, ((0, WS - Cin), (0, 0)))
    x_b = x_flat.astype(jnp.bfloat16)

    # Parameters: one f32 weight slab + one bias column (in real use: packed once).
    w1_taps = jnp.transpose(w1_oihw, (2, 3, 0, 1)).reshape(9 * Cb, Cin)  # row=(ky*3+kx)*Cb+co
    w1_taps = jnp.pad(w1_taps, ((0, 0), (0, WS - Cin)))
    w2_rows = jnp.pad(w2_oihw[:, :, 0, 0], ((0, 0), (0, WS - Cb)))       # (Cout, WS)
    w_slab = jnp.concatenate([w1_taps, w2_rows], axis=0).astype(jnp.float32)
    b_col = jnp.concatenate([b1, b2]).reshape(Cb + Cout, 1).astype(jnp.float32)

    cost = pl.CostEstimate(
        flops=2 * NHW * (9 * Cin * Cb + Cb * Cout),
        transcendentals=0,
        bytes_accessed=(2 * WS * NHW                      # x (bf16)
                        + 4 * (9 * Cb + Cout) * WS        # weight slab
                        + 4 * (Cb + Cout)                 # biases
                        + 4 * Cout * NHW),                # output
    )

    out_flat = pl.pallas_call(
        functools.partial(_outblock_kernel, cb=Cb, cout=Cout, h=H, w=W),
        out_shape=jax.ShapeDtypeStruct((Cout, NHW), jnp.float32),
        in_specs=[
            pl.BlockSpec(memory_space=pltpu.MemorySpace.VMEM),
            pl.BlockSpec(memory_space=pltpu.MemorySpace.VMEM),
            pl.BlockSpec(memory_space=pltpu.MemorySpace.VMEM),
        ],
        out_specs=pl.BlockSpec(memory_space=pltpu.MemorySpace.VMEM),
        cost_estimate=cost,
    )(x_b, w_slab, b_col)

    # (Cout, N*HW) -> (N, Cout, H, W)
    return out_flat.reshape(Cout, N, H, W).transpose(1, 0, 2, 3)


def out_block_reference(x_nchw, w1_oihw, b1, w2_oihw, b2):
    """Pure-JAX f32 reference (mirrors the PyTorch forward) for verification."""
    dn = ('NCHW', 'OIHW', 'NCHW')
    out = lax.conv_general_dilated(x_nchw, w1_oihw, (1, 1), 'SAME',
                                   dimension_numbers=dn)
    out = out + b1[None, :, None, None]
    out = jnp.maximum(out, 0.0)
    out = lax.conv_general_dilated(out, w2_oihw, (1, 1), 'SAME',
                                   dimension_numbers=dn)
    out = out + b2[None, :, None, None]
    return out


if __name__ == "__main__":
    # OutBlock(in_channels=4, block_channels=8, out_channels=3)
    N, Cin, H, W = 2, 4, 16, 16
    Cb, Cout = 8, 3

    key = jax.random.PRNGKey(0)
    kx, k1, k2, k3, k4 = jax.random.split(key, 5)

    x = jax.random.normal(kx, (N, Cin, H, W), dtype=jnp.float32)
    w1 = jax.random.normal(k1, (Cb, Cin, 3, 3), dtype=jnp.float32) * 0.1
    b1 = jax.random.normal(k2, (Cb,), dtype=jnp.float32) * 0.1
    w2 = jax.random.normal(k3, (Cout, Cb, 1, 1), dtype=jnp.float32) * 0.1
    b2 = jax.random.normal(k4, (Cout,), dtype=jnp.float32) * 0.1

    out = jax.block_until_ready(out_block_pallas(x, w1, b1, w2, b2))
    ref = out_block_reference(x, w1, b1, w2, b2)

    assert out.shape == (N, Cout, H, W), out.shape
    # bf16 MXU operands -> loosened tolerance vs. the f32 lax.conv reference.
    max_err = float(jnp.max(jnp.abs(out - ref)))
    assert max_err < 5e-2, max_err

    print("KERNEL_OK")
</pallas_src>

<mosaic_0001>
module attributes {stable_mosaic.version = 11 : i64} {
  func.func @_outblock_kernel(%arg0: memref<8x512xbf16, #tpu.memory_space<vmem>>, %arg1: memref<75x8xf32, #tpu.memory_space<vmem>>, %arg2: memref<11x1xf32, #tpu.memory_space<vmem>>, %arg3: memref<3x512xf32, #tpu.memory_space<vmem>>) attributes {dimension_semantics = [], scalar_prefetch = 0 : i64, scratch_operands = 0 : i64, tpu.core_type = #tpu.core_type<tc>} {
    %c0 = arith.constant 0 : index
    %c0_0 = arith.constant 0 : index
    %0 = vector.load %arg0[%c0, %c0_0] : memref<8x512xbf16, #tpu.memory_space<vmem>>, vector<8x512xbf16>
    %1 = arith.extf %0 : vector<8x512xbf16> to vector<8x512xf32>
    %2 = tpu.iota {dimensions = array<i32: 1>} : vector<1x512xi32>
    %c15_i32 = arith.constant 15 : i32
    %3 = vector.broadcast %c15_i32 : i32 to vector<1x512xi32>
    %4 = arith.andi %2, %3 : vector<1x512xi32>
    %c4_i32 = arith.constant 4 : i32
    %5 = vector.broadcast %c4_i32 : i32 to vector<1x512xi32>
    %6 = arith.shrsi %2, %5 : vector<1x512xi32>
    %c15_i32_1 = arith.constant 15 : i32
    %7 = vector.broadcast %c15_i32_1 : i32 to vector<1x512xi32>
    %8 = arith.andi %6, %7 : vector<1x512xi32>
    %cst = arith.constant 0.000000e+00 : f32
    %9 = vector.broadcast %cst : f32 to vector<8x512xf32>
    %c17_i32 = arith.constant 17 : i32
    %10 = tpu.dynamic_rotate %1 by %c17_i32 dim 1 : vector<8x512xf32>, i32 -> vector<8x512xf32>
    %c-1_i32 = arith.constant -1 : i32
    %11 = vector.broadcast %c-1_i32 : i32 to vector<1x512xi32>
    %12 = arith.addi %8, %11 : vector<1x512xi32>
    %c0_i32 = arith.constant 0 : i32
    %13 = vector.broadcast %c0_i32 : i32 to vector<1x512xi32>
    %14 = arith.cmpi sge, %12, %13 : vector<1x512xi32>
    %c-1_i32_2 = arith.constant -1 : i32
    %15 = vector.broadcast %c-1_i32_2 : i32 to vector<1x512xi32>
    %16 = arith.addi %8, %15 : vector<1x512xi32>
    %c16_i32 = arith.constant 16 : i32
    %17 = vector.broadcast %c16_i32 : i32 to vector<1x512xi32>
    %18 = arith.cmpi slt, %16, %17 : vector<1x512xi32>
    %19 = arith.andi %14, %18 : vector<1x512xi1>
    %c-1_i32_3 = arith.constant -1 : i32
    %20 = vector.broadcast %c-1_i32_3 : i32 to vector<1x512xi32>
    %21 = arith.addi %4, %20 : vector<1x512xi32>
    %c0_i32_4 = arith.constant 0 : i32
    %22 = vector.broadcast %c0_i32_4 : i32 to vector<1x512xi32>
    %23 = arith.cmpi sge, %21, %22 : vector<1x512xi32>
    %c-1_i32_5 = arith.constant -1 : i32
    %24 = vector.broadcast %c-1_i32_5 : i32 to vector<1x512xi32>
    %25 = arith.addi %4, %24 : vector<1x512xi32>
    %c16_i32_6 = arith.constant 16 : i32
    %26 = vector.broadcast %c16_i32_6 : i32 to vector<1x512xi32>
    %27 = arith.cmpi slt, %25, %26 : vector<1x512xi32>
    %28 = arith.andi %23, %27 : vector<1x512xi1>
    %29 = arith.andi %19, %28 : vector<1x512xi1>
    %cst_7 = arith.constant 0.000000e+00 : f32
    %30 = vector.shape_cast %29 : vector<1x512xi1> to vector<1x512xi1>
    %31 = vector.broadcast %30 : vector<1x512xi1> to vector<8x512xi1>
    %32 = vector.broadcast %cst_7 : f32 to vector<8x512xf32>
    %33 = arith.select %31, %10, %32 : vector<8x512xi1>, vector<8x512xf32>
    %c0_8 = arith.constant 0 : index
    %c0_9 = arith.constant 0 : index
    %34 = vector.load %arg1[%c0_8, %c0_9] : memref<75x8xf32, #tpu.memory_space<vmem>>, vector<8x8xf32>
    %35 = arith.truncf %34 : vector<8x8xf32> to vector<8x8xbf16>
    %36 = arith.truncf %33 : vector<8x512xf32> to vector<8x512xbf16>
    %cst_10 = arith.constant dense<0.000000e+00> : vector<8x512xf32>
    %37 = tpu.matmul %35, %36, %cst_10 {dimension_numbers = #tpu.dot_dimension_numbers<[1], [0], [0], [1], [0, 0, 1, 1], [], []>} : vector<8x8xbf16>, vector<8x512xbf16>, vector<8x512xf32> -> vector<8x512xf32>
    %38 = arith.addf %9, %37 : vector<8x512xf32>
    %c16_i32_11 = arith.constant 16 : i32
    %39 = tpu.dynamic_rotate %1 by %c16_i32_11 dim 1 : vector<8x512xf32>, i32 -> vector<8x512xf32>
    %c-1_i32_12 = arith.constant -1 : i32
    %40 = vector.broadcast %c-1_i32_12 : i32 to vector<1x512xi32>
    %41 = arith.addi %8, %40 : vector<1x512xi32>
    %c0_i32_13 = arith.constant 0 : i32
    %42 = vector.broadcast %c0_i32_13 : i32 to vector<1x512xi32>
    %43 = arith.cmpi sge, %41, %42 : vector<1x512xi32>
    %c-1_i32_14 = arith.constant -1 : i32
    %44 = vector.broadcast %c-1_i32_14 : i32 to vector<1x512xi32>
    %45 = arith.addi %8, %44 : vector<1x512xi32>
    %c16_i32_15 = arith.constant 16 : i32
    %46 = vector.broadcast %c16_i32_15 : i32 to vector<1x512xi32>
    %47 = arith.cmpi slt, %45, %46 : vector<1x512xi32>
    %48 = arith.andi %43, %47 : vector<1x512xi1>
    %cst_16 = arith.constant 0.000000e+00 : f32
    %49 = vector.shape_cast %48 : vector<1x512xi1> to vector<1x512xi1>
    %50 = vector.broadcast %49 : vector<1x512xi1> to vector<8x512xi1>
    %51 = vector.broadcast %cst_16 : f32 to vector<8x512xf32>
    %52 = arith.select %50, %39, %51 : vector<8x512xi1>, vector<8x512xf32>
    %c8 = arith.constant 8 : index
    %c0_17 = arith.constant 0 : index
    %53 = vector.load %arg1[%c8, %c0_17] : memref<75x8xf32, #tpu.memory_space<vmem>>, vector<8x8xf32>
    %54 = arith.truncf %53 : vector<8x8xf32> to vector<8x8xbf16>
    %55 = arith.truncf %52 : vector<8x512xf32> to vector<8x512xbf16>
    %cst_18 = arith.constant dense<0.000000e+00> : vector<8x512xf32>
    %56 = tpu.matmul %54, %55, %cst_18 {dimension_numbers = #tpu.dot_dimension_numbers<[1], [0], [0], [1], [0, 0, 1, 1], [], []>} : vector<8x8xbf16>, vector<8x512xbf16>, vector<8x512xf32> -> vector<8x512xf32>
    %57 = arith.addf %38, %56 : vector<8x512xf32>
    %c15_i32_19 = arith.constant 15 : i32
    %58 = tpu.dynamic_rotate %1 by %c15_i32_19 dim 1 : vector<8x512xf32>, i32 -> vector<8x512xf32>
    %c-1_i32_20 = arith.constant -1 : i32
    %59 = vector.broadcast %c-1_i32_20 : i32 to vector<1x512xi32>
    %60 = arith.addi %8, %59 : vector<1x512xi32>
    %c0_i32_21 = arith.constant 0 : i32
    %61 = vector.broadcast %c0_i32_21 : i32 to vector<1x512xi32>
    %62 = arith.cmpi sge, %60, %61 : vector<1x512xi32>
    %c-1_i32_22 = arith.constant -1 : i32
    %63 = vector.broadcast %c-1_i32_22 : i32 to vector<1x512xi32>
    %64 = arith.addi %8, %63 : vector<1x512xi32>
    %c16_i32_23 = arith.constant 16 : i32
    %65 = vector.broadcast %c16_i32_23 : i32 to vector<1x512xi32>
    %66 = arith.cmpi slt, %64, %65 : vector<1x512xi32>
    %67 = arith.andi %62, %66 : vector<1x512xi1>
    %c1_i32 = arith.constant 1 : i32
    %68 = vector.broadcast %c1_i32 : i32 to vector<1x512xi32>
    %69 = arith.addi %4, %68 : vector<1x512xi32>
    %c0_i32_24 = arith.constant 0 : i32
    %70 = vector.broadcast %c0_i32_24 : i32 to vector<1x512xi32>
    %71 = arith.cmpi sge, %69, %70 : vector<1x512xi32>
    %c1_i32_25 = arith.constant 1 : i32
    %72 = vector.broadcast %c1_i32_25 : i32 to vector<1x512xi32>
    %73 = arith.addi %4, %72 : vector<1x512xi32>
    %c16_i32_26 = arith.constant 16 : i32
    %74 = vector.broadcast %c16_i32_26 : i32 to vector<1x512xi32>
    %75 = arith.cmpi slt, %73, %74 : vector<1x512xi32>
    %76 = arith.andi %71, %75 : vector<1x512xi1>
    %77 = arith.andi %67, %76 : vector<1x512xi1>
    %cst_27 = arith.constant 0.000000e+00 : f32
    %78 = vector.shape_cast %77 : vector<1x512xi1> to vector<1x512xi1>
    %79 = vector.broadcast %78 : vector<1x512xi1> to vector<8x512xi1>
    %80 = vector.broadcast %cst_27 : f32 to vector<8x512xf32>
    %81 = arith.select %79, %58, %80 : vector<8x512xi1>, vector<8x512xf32>
    %c16 = arith.constant 16 : index
    %c0_28 = arith.constant 0 : index
    %82 = vector.load %arg1[%c16, %c0_28] : memref<75x8xf32, #tpu.memory_space<vmem>>, vector<8x8xf32>
    %83 = arith.truncf %82 : vector<8x8xf32> to vector<8x8xbf16>
    %84 = arith.truncf %81 : vector<8x512xf32> to vector<8x512xbf16>
    %cst_29 = arith.constant dense<0.000000e+00> : vector<8x512xf32>
    %85 = tpu.matmul %83, %84, %cst_29 {dimension_numbers = #tpu.dot_dimension_numbers<[1], [0], [0], [1], [0, 0, 1, 1], [], []>} : vector<8x8xbf16>, vector<8x512xbf16>, vector<8x512xf32> -> vector<8x512xf32>
    %86 = arith.addf %57, %85 : vector<8x512xf32>
    %c1_i32_30 = arith.constant 1 : i32
    %87 = tpu.dynamic_rotate %1 by %c1_i32_30 dim 1 : vector<8x512xf32>, i32 -> vector<8x512xf32>
    %c-1_i32_31 = arith.constant -1 : i32
    %88 = vector.broadcast %c-1_i32_31 : i32 to vector<1x512xi32>
    %89 = arith.addi %4, %88 : vector<1x512xi32>
    %c0_i32_32 = arith.constant 0 : i32
    %90 = vector.broadcast %c0_i32_32 : i32 to vector<1x512xi32>
    %91 = arith.cmpi sge, %89, %90 : vector<1x512xi32>
    %c-1_i32_33 = arith.constant -1 : i32
    %92 = vector.broadcast %c-1_i32_33 : i32 to vector<1x512xi32>
    %93 = arith.addi %4, %92 : vector<1x512xi32>
    %c16_i32_34 = arith.constant 16 : i32
    %94 = vector.broadcast %c16_i32_34 : i32 to vector<1x512xi32>
    %95 = arith.cmpi slt, %93, %94 : vector<1x512xi32>
    %96 = arith.andi %91, %95 : vector<1x512xi1>
    %cst_35 = arith.constant 0.000000e+00 : f32
    %97 = vector.shape_cast %96 : vector<1x512xi1> to vector<1x512xi1>
    %98 = vector.broadcast %97 : vector<1x512xi1> to vector<8x512xi1>
    %99 = vector.broadcast %cst_35 : f32 to vector<8x512xf32>
    %100 = arith.select %98, %87, %99 : vector<8x512xi1>, vector<8x512xf32>
    %c24 = arith.constant 24 : index
    %c0_36 = arith.constant 0 : index
    %101 = vector.load %arg1[%c24, %c0_36] : memref<75x8xf32, #tpu.memory_space<vmem>>, vector<8x8xf32>
    %102 = arith.truncf %101 : vector<8x8xf32> to vector<8x8xbf16>
    %103 = arith.truncf %100 : vector<8x512xf32> to vector<8x512xbf16>
    %cst_37 = arith.constant dense<0.000000e+00> : vector<8x512xf32>
    %104 = tpu.matmul %102, %103, %cst_37 {dimension_numbers = #tpu.dot_dimension_numbers<[1], [0], [0], [1], [0, 0, 1, 1], [], []>} : vector<8x8xbf16>, vector<8x512xbf16>, vector<8x512xf32> -> vector<8x512xf32>
    %105 = arith.addf %86, %104 : vector<8x512xf32>
    %c32 = arith.constant 32 : index
    %c0_38 = arith.constant 0 : index
    %106 = vector.load %arg1[%c32, %c0_38] : memref<75x8xf32, #tpu.memory_space<vmem>>, vector<8x8xf32>
    %107 = arith.truncf %106 : vector<8x8xf32> to vector<8x8xbf16>
    %108 = arith.truncf %1 : vector<8x512xf32> to vector<8x512xbf16>
    %cst_39 = arith.constant dense<0.000000e+00> : vector<8x512xf32>
    %109 = tpu.matmul %107, %108, %cst_39 {dimension_numbers = #tpu.dot_dimension_numbers<[1], [0], [0], [1], [0, 0, 1, 1], [], []>} : vector<8x8xbf16>, vector<8x512xbf16>, vector<8x512xf32> -> vector<8x512xf32>
    %110 = arith.addf %105, %109 : vector<8x512xf32>
    %c511_i32 = arith.constant 511 : i32
    %111 = tpu.dynamic_rotate %1 by %c511_i32 dim 1 : vector<8x512xf32>, i32 -> vector<8x512xf32>
    %c1_i32_40 = arith.constant 1 : i32
    %112 = vector.broadcast %c1_i32_40 : i32 to vector<1x512xi32>
    %113 = arith.addi %4, %112 : vector<1x512xi32>
    %c0_i32_41 = arith.constant 0 : i32
    %114 = vector.broadcast %c0_i32_41 : i32 to vector<1x512xi32>
    %115 = arith.cmpi sge, %113, %114 : vector<1x512xi32>
    %c1_i32_42 = arith.constant 1 : i32
    %116 = vector.broadcast %c1_i32_42 : i32 to vector<1x512xi32>
    %117 = arith.addi %4, %116 : vector<1x512xi32>
    %c16_i32_43 = arith.constant 16 : i32
    %118 = vector.broadcast %c16_i32_43 : i32 to vector<1x512xi32>
    %119 = arith.cmpi slt, %117, %118 : vector<1x512xi32>
    %120 = arith.andi %115, %119 : vector<1x512xi1>
    %cst_44 = arith.constant 0.000000e+00 : f32
    %121 = vector.shape_cast %120 : vector<1x512xi1> to vector<1x512xi1>
    %122 = vector.broadcast %121 : vector<1x512xi1> to vector<8x512xi1>
    %123 = vector.broadcast %cst_44 : f32 to vector<8x512xf32>
    %124 = arith.select %122, %111, %123 : vector<8x512xi1>, vector<8x512xf32>
    %c40 = arith.constant 40 : index
    %c0_45 = arith.constant 0 : index
    %125 = vector.load %arg1[%c40, %c0_45] : memref<75x8xf32, #tpu.memory_space<vmem>>, vector<8x8xf32>
    %126 = arith.truncf %125 : vector<8x8xf32> to vector<8x8xbf16>
    %127 = arith.truncf %124 : vector<8x512xf32> to vector<8x512xbf16>
    %cst_46 = arith.constant dense<0.000000e+00> : vector<8x512xf32>
    %128 = tpu.matmul %126, %127, %cst_46 {dimension_numbers = #tpu.dot_dimension_numbers<[1], [0], [0], [1], [0, 0, 1, 1], [], []>} : vector<8x8xbf16>, vector<8x512xbf16>, vector<8x512xf32> -> vector<8x512xf32>
    %129 = arith.addf %110, %128 : vector<8x512xf32>
    %c497_i32 = arith.constant 497 : i32
    %130 = tpu.dynamic_rotate %1 by %c497_i32 dim 1 : vector<8x512xf32>, i32 -> vector<8x512xf32>
    %c1_i32_47 = arith.constant 1 : i32
    %131 = vector.broadcast %c1_i32_47 : i32 to vector<1x512xi32>
    %132 = arith.addi %8, %131 : vector<1x512xi32>
    %c0_i32_48 = arith.constant 0 : i32
    %133 = vector.broadcast %c0_i32_48 : i32 to vector<1x512xi32>
    %134 = arith.cmpi sge, %132, %133 : vector<1x512xi32>
    %c1_i32_49 = arith.constant 1 : i32
    %135 = vector.broadcast %c1_i32_49 : i32 to vector<1x512xi32>
    %136 = arith.addi %8, %135 : vector<1x512xi32>
    %c16_i32_50 = arith.constant 16 : i32
    %137 = vector.broadcast %c16_i32_50 : i32 to vector<1x512xi32>
    %138 = arith.cmpi slt, %136, %137 : vector<1x512xi32>
    %139 = arith.andi %134, %138 : vector<1x512xi1>
    %c-1_i32_51 = arith.constant -1 : i32
    %140 = vector.broadcast %c-1_i32_51 : i32 to vector<1x512xi32>
    %141 = arith.addi %4, %140 : vector<1x512xi32>
    %c0_i32_52 = arith.constant 0 : i32
    %142 = vector.broadcast %c0_i32_52 : i32 to vector<1x512xi32>
    %143 = arith.cmpi sge, %141, %142 : vector<1x512xi32>
    %c-1_i32_53 = arith.constant -1 : i32
    %144 = vector.broadcast %c-1_i32_53 : i32 to vector<1x512xi32>
    %145 = arith.addi %4, %144 : vector<1x512xi32>
    %c16_i32_54 = arith.constant 16 : i32
    %146 = vector.broadcast %c16_i32_54 : i32 to vector<1x512xi32>
    %147 = arith.cmpi slt, %145, %146 : vector<1x512xi32>
    %148 = arith.andi %143, %147 : vector<1x512xi1>
    %149 = arith.andi %139, %148 : vector<1x512xi1>
    %cst_55 = arith.constant 0.000000e+00 : f32
    %150 = vector.shape_cast %149 : vector<1x512xi1> to vector<1x512xi1>
    %151 = vector.broadcast %150 : vector<1x512xi1> to vector<8x512xi1>
    %152 = vector.broadcast %cst_55 : f32 to vector<8x512xf32>
    %153 = arith.select %151, %130, %152 : vector<8x512xi1>, vector<8x512xf32>
    %c48 = arith.constant 48 : index
    %c0_56 = arith.constant 0 : index
    %154 = vector.load %arg1[%c48, %c0_56] : memref<75x8xf32, #tpu.memory_space<vmem>>, vector<8x8xf32>
    %155 = arith.truncf %154 : vector<8x8xf32> to vector<8x8xbf16>
    %156 = arith.truncf %153 : vector<8x512xf32> to vector<8x512xbf16>
    %cst_57 = arith.constant dense<0.000000e+00> : vector<8x512xf32>
    %157 = tpu.matmul %155, %156, %cst_57 {dimension_numbers = #tpu.dot_dimension_numbers<[1], [0], [0], [1], [0, 0, 1, 1], [], []>} : vector<8x8xbf16>, vector<8x512xbf16>, vector<8x512xf32> -> vector<8x512xf32>
    %158 = arith.addf %129, %157 : vector<8x512xf32>
    %c496_i32 = arith.constant 496 : i32
    %159 = tpu.dynamic_rotate %1 by %c496_i32 dim 1 : vector<8x512xf32>, i32 -> vector<8x512xf32>
    %c1_i32_58 = arith.constant 1 : i32
    %160 = vector.broadcast %c1_i32_58 : i32 to vector<1x512xi32>
    %161 = arith.addi %8, %160 : vector<1x512xi32>
    %c0_i32_59 = arith.constant 0 : i32
    %162 = vector.broadcast %c0_i32_59 : i32 to vector<1x512xi32>
    %163 = arith.cmpi sge, %161, %162 : vector<1x512xi32>
    %c1_i32_60 = arith.constant 1 : i32
    %164 = vector.broadcast %c1_i32_60 : i32 to vector<1x512xi32>
    %165 = arith.addi %8, %164 : vector<1x512xi32>
    %c16_i32_61 = arith.constant 16 : i32
    %166 = vector.broadcast %c16_i32_61 : i32 to vector<1x512xi32>
    %167 = arith.cmpi slt, %165, %166 : vector<1x512xi32>
    %168 = arith.andi %163, %167 : vector<1x512xi1>
    %cst_62 = arith.constant 0.000000e+00 : f32
    %169 = vector.shape_cast %168 : vector<1x512xi1> to vector<1x512xi1>
    %170 = vector.broadcast %169 : vector<1x512xi1> to vector<8x512xi1>
    %171 = vector.broadcast %cst_62 : f32 to vector<8x512xf32>
    %172 = arith.select %170, %159, %171 : vector<8x512xi1>, vector<8x512xf32>
    %c56 = arith.constant 56 : index
    %c0_63 = arith.constant 0 : index
    %173 = vector.load %arg1[%c56, %c0_63] : memref<75x8xf32, #tpu.memory_space<vmem>>, vector<8x8xf32>
    %174 = arith.truncf %173 : vector<8x8xf32> to vector<8x8xbf16>
    %175 = arith.truncf %172 : vector<8x512xf32> to vector<8x512xbf16>
    %cst_64 = arith.constant dense<0.000000e+00> : vector<8x512xf32>
    %176 = tpu.matmul %174, %175, %cst_64 {dimension_numbers = #tpu.dot_dimension_numbers<[1], [0], [0], [1], [0, 0, 1, 1], [], []>} : vector<8x8xbf16>, vector<8x512xbf16>, vector<8x512xf32> -> vector<8x512xf32>
    %177 = arith.addf %158, %176 : vector<8x512xf32>
    %c495_i32 = arith.constant 495 : i32
    %178 = tpu.dynamic_rotate %1 by %c495_i32 dim 1 : vector<8x512xf32>, i32 -> vector<8x512xf32>
    %c1_i32_65 = arith.constant 1 : i32
    %179 = vector.broadcast %c1_i32_65 : i32 to vector<1x512xi32>
    %180 = arith.addi %8, %179 : vector<1x512xi32>
    %c0_i32_66 = arith.constant 0 : i32
    %181 = vector.broadcast %c0_i32_66 : i32 to vector<1x512xi32>
    %182 = arith.cmpi sge, %180, %181 : vector<1x512xi32>
    %c1_i32_67 = arith.constant 1 : i32
    %183 = vector.broadcast %c1_i32_67 : i32 to vector<1x512xi32>
    %184 = arith.addi %8, %183 : vector<1x512xi32>
    %c16_i32_68 = arith.constant 16 : i32
    %185 = vector.broadcast %c16_i32_68 : i32 to vector<1x512xi32>
    %186 = arith.cmpi slt, %184, %185 : vector<1x512xi32>
    %187 = arith.andi %182, %186 : vector<1x512xi1>
    %c1_i32_69 = arith.constant 1 : i32
    %188 = vector.broadcast %c1_i32_69 : i32 to vector<1x512xi32>
    %189 = arith.addi %4, %188 : vector<1x512xi32>
    %c0_i32_70 = arith.constant 0 : i32
    %190 = vector.broadcast %c0_i32_70 : i32 to vector<1x512xi32>
    %191 = arith.cmpi sge, %189, %190 : vector<1x512xi32>
    %c1_i32_71 = arith.constant 1 : i32
    %192 = vector.broadcast %c1_i32_71 : i32 to vector<1x512xi32>
    %193 = arith.addi %4, %192 : vector<1x512xi32>
    %c16_i32_72 = arith.constant 16 : i32
    %194 = vector.broadcast %c16_i32_72 : i32 to vector<1x512xi32>
    %195 = arith.cmpi slt, %193, %194 : vector<1x512xi32>
    %196 = arith.andi %191, %195 : vector<1x512xi1>
    %197 = arith.andi %187, %196 : vector<1x512xi1>
    %cst_73 = arith.constant 0.000000e+00 : f32
    %198 = vector.shape_cast %197 : vector<1x512xi1> to vector<1x512xi1>
    %199 = vector.broadcast %198 : vector<1x512xi1> to vector<8x512xi1>
    %200 = vector.broadcast %cst_73 : f32 to vector<8x512xf32>
    %201 = arith.select %199, %178, %200 : vector<8x512xi1>, vector<8x512xf32>
    %c64 = arith.constant 64 : index
    %c0_74 = arith.constant 0 : index
    %202 = vector.load %arg1[%c64, %c0_74] : memref<75x8xf32, #tpu.memory_space<vmem>>, vector<8x8xf32>
    %203 = arith.truncf %202 : vector<8x8xf32> to vector<8x8xbf16>
    %204 = arith.truncf %201 : vector<8x512xf32> to vector<8x512xbf16>
    %cst_75 = arith.constant dense<0.000000e+00> : vector<8x512xf32>
    %205 = tpu.matmul %203, %204, %cst_75 {dimension_numbers = #tpu.dot_dimension_numbers<[1], [0], [0], [1], [0, 0, 1, 1], [], []>} : vector<8x8xbf16>, vector<8x512xbf16>, vector<8x512xf32> -> vector<8x512xf32>
    %206 = arith.addf %177, %205 : vector<8x512xf32>
    %c0_76 = arith.constant 0 : index
    %c0_77 = arith.constant 0 : index
    %207 = vector.load %arg2[%c0_76, %c0_77] : memref<11x1xf32, #tpu.memory_space<vmem>>, vector<8x1xf32>
    %208 = vector.broadcast %207 : vector<8x1xf32> to vector<8x512xf32>
    %209 = arith.addf %206, %208 : vector<8x512xf32>
    %cst_78 = arith.constant 0.000000e+00 : f32
    %210 = vector.broadcast %cst_78 : f32 to vector<8x512xf32>
    %211 = arith.maximumf %209, %210 : vector<8x512xf32>
    %c72 = arith.constant 72 : index
    %c0_79 = arith.constant 0 : index
    %212 = vector.load %arg1[%c72, %c0_79] : memref<75x8xf32, #tpu.memory_space<vmem>>, vector<3x8xf32>
    %213 = arith.truncf %212 : vector<3x8xf32> to vector<3x8xbf16>
    %c8_80 = arith.constant 8 : index
    %c0_81 = arith.constant 0 : index
    %214 = vector.load %arg2[%c8_80, %c0_81] : memref<11x1xf32, #tpu.memory_space<vmem>>, vector<3x1xf32>
    %215 = arith.truncf %211 : vector<8x512xf32> to vector<8x512xbf16>
    %cst_82 = arith.constant dense<0.000000e+00> : vector<3x512xf32>
    %216 = tpu.matmul %213, %215, %cst_82 {dimension_numbers = #tpu.dot_dimension_numbers<[1], [0], [0], [1], [0, 0, 1, 1], [], []>} : vector<3x8xbf16>, vector<8x512xbf16>, vector<3x512xf32> -> vector<3x512xf32>
    %217 = vector.broadcast %214 : vector<3x1xf32> to vector<3x512xf32>
    %218 = arith.addf %216, %217 : vector<3x512xf32>
    %c0_83 = arith.constant 0 : index
    %c0_84 = arith.constant 0 : index
    %219 = vector.load %arg3[%c0_83, %c0_84] : memref<3x512xf32, #tpu.memory_space<vmem>>, vector<3x512xf32>
    tpu.vector_store %arg3[%c0_83, %c0_84], %218 {strides = array<i32>} : memref<3x512xf32, #tpu.memory_space<vmem>>, vector<3x512xf32>,
    return
  }
}

</mosaic_0001>

<llo_original>
// kernel: out_block_pallas.1
$region0: #{out_block_pallas.1}
  #allocation0 [shape = 'u32[]', space=smem, size = 0x4, offset = 0x4, fixed_abs, tag = 'smem constant byte address 0x4 - core index']
  #allocation1 [shape = 'u32[72,128]{1,0:T(1,128)}', space=vmem, size = 0x9000, scoped, tag = 'internal scratch']
  %s0 = inlined_call_operand.vmem [shape: bf16[8,512], index: 0, kind: input, shape index: {}]
  %s1 = inlined_call_operand.vmem [shape: f32[75,8], index: 1, kind: input, shape index: {}]
  %s2 = inlined_call_operand.vmem [shape: f32[11,1], index: 2, kind: input, shape index: {}]
  %s3 = inlined_call_operand.vmem [shape: f32[3,512], index: 3, kind: output, shape index: {}]
  %s4 = sld [smem:[#allocation0]]
  $region22: #{out_block_pallas.1} parent=0
    _
  %s6 = ssub.s32 1, %s4
  %s7 = scalar_select 0, %s6, %s4
  // Predicated region
  $region2: #{out_block_pallas.1} parent=0 // pred_check
    _
  $region3: #{out_block_pallas.1} parent=0 // pred_check_branch
    %9 = sbr.rel (0) target = $region5
  $region4: #{out_block_pallas.1} parent=0 // pred_region
    _
  $region5: #{out_block_pallas.1} parent=0 // pred_fallthru
    _
  // Predicated region
  $region6: #{out_block_pallas.1} parent=0 // pred_check
    _
  $region7: #{out_block_pallas.1} parent=0 // pred_check_branch
    %11 = sbr.rel (0) target = $region9
  $region8: #{out_block_pallas.1} parent=0 // pred_region
    _
  $region9: #{out_block_pallas.1} parent=0 // pred_fallthru
    _
  // Predicated region
  $region10: #{out_block_pallas.1} parent=0 // pred_check
    _
  $region11: #{out_block_pallas.1} parent=0 // pred_check_branch
    %13 = sbr.rel (0) target = $region13
  $region12: #{out_block_pallas.1} parent=0 // pred_region
    _
  $region13: #{out_block_pallas.1} parent=0 // pred_fallthru
    _
  %v15 = vld [vmem:[%s0] sm:$0xff]
  %v16 = vld [vmem:[%s0 + $0x8] sm:$0xff]
  %v17 = vunpack.c.l.bf16 %v15
  %v18 = vunpack.c.h.bf16 %v15
  %v19 = vunpack.c.l.bf16 %v16
  %v20 = vunpack.c.h.bf16 %v16
  %v21 = vlaneseq
  %v22 = vand.u32 %v21, 127
  %v23 = vadd.s32 %v22, 128
  %v24 = vadd.s32 %v22, 256
  %v25 = vadd.s32 %v22, 384
  %v26 = vand.u32 %v22, 15
  %v27 = vand.u32 %v23, 15
  %v28 = vand.u32 %v24, 15
  %v29 = vand.u32 %v25, 15
  %v30 = vshra.s32 %v22, 4
  %v31 = vshra.s32 %v23, 4
  %v32 = vshra.s32 %v24, 4
  %v33 = vshra.s32 %v25, 4
  %v34 = vand.u32 %v30, 15
  %v35 = vand.u32 %v31, 15
  %v36 = vand.u32 %v32, 15
  %v37 = vand.u32 %v33, 15
  %38 = vrot.lane.b32.xlu0 %v17, 17
  %v39 = vpop.permute.xlu0 %38
  %40 = vrot.lane.b32.xlu0 %v18, 17
  %v41 = vpop.permute.xlu0 %40
  %42 = vrot.lane.b32.xlu0 %v19, 17
  %v43 = vpop.permute.xlu0 %42
  %44 = vrot.lane.b32.xlu0 %v20, 17
  %v45 = vpop.permute.xlu0 %44
  %vm46 = vcmp.lt.s32.totalorder %v22, 17
  %v47 = vsel %vm46, %v43, %v45
  %v48 = vsel %vm46, %v41, %v43
  %v49 = vsel %vm46, %v39, %v41
  %v50 = vsel %vm46, %v45, %v39
  %v51 = vadd.s32 %v34, 4294967295
  %v52 = vadd.s32 %v35, 4294967295
  %v53 = vadd.s32 %v36, 4294967295
  %v54 = vadd.s32 %v37, 4294967295
  %vm55 = vcmp.ge.s32.totalorder %v51, 0
  %vm56 = vcmp.ge.s32.totalorder %v52, 0
  %vm57 = vcmp.ge.s32.totalorder %v53, 0
  %vm58 = vcmp.ge.s32.totalorder %v54, 0
  %vm59 = vcmp.lt.s32.totalorder %v51, 16
  %vm60 = vcmp.lt.s32.totalorder %v52, 16
  %vm61 = vcmp.lt.s32.totalorder %v53, 16
  %vm62 = vcmp.lt.s32.totalorder %v54, 16
  %vm63 = vmand %vm55, %vm59
  %vm64 = vmand %vm56, %vm60
  %vm65 = vmand %vm57, %vm61
  %vm66 = vmand %vm58, %vm62
  %v67 = vadd.s32 %v26, 4294967295
  %v68 = vadd.s32 %v27, 4294967295
  %v69 = vadd.s32 %v28, 4294967295
  %v70 = vadd.s32 %v29, 4294967295
  %vm71 = vcmp.ge.s32.totalorder %v67, 0
  %vm72 = vcmp.ge.s32.totalorder %v68, 0
  %vm73 = vcmp.ge.s32.totalorder %v69, 0
  %vm74 = vcmp.ge.s32.totalorder %v70, 0
  %vm75 = vcmp.lt.s32.totalorder %v67, 16
  %vm76 = vcmp.lt.s32.totalorder %v68, 16
  %vm77 = vcmp.lt.s32.totalorder %v69, 16
  %vm78 = vcmp.lt.s32.totalorder %v70, 16
  %vm79 = vmand %vm71, %vm75
  %vm80 = vmand %vm72, %vm76
  %vm81 = vmand %vm73, %vm77
  %vm82 = vmand %vm74, %vm78
  %vm83 = vmand %vm63, %vm79
  %vm84 = vmand %vm64, %vm80
  %vm85 = vmand %vm65, %vm81
  %vm86 = vmand %vm66, %vm82
  %v87 = vsel %vm83, 1, 0
  %v88 = vsel %vm84, 1, 0
  %v89 = vsel %vm85, 1, 0
  %v90 = vsel %vm86, 1, 0
  %vm91 = vcmp.eq.s32.totalorder %v87, 1
  %vm92 = vcmp.eq.s32.totalorder %v88, 1
  %vm93 = vcmp.eq.s32.totalorder %v89, 1
  %vm94 = vcmp.eq.s32.totalorder %v90, 1
  %v95 = vsel %vm91, %v50, 0.0
  %v96 = vsel %vm92, %v49, 0.0
  %v97 = vsel %vm93, %v48, 0.0
  %v98 = vsel %vm94, %v47, 0.0
  %v99 = vld [vmem:[%s1] sm:$0xff]
  %v100 = vpack.c.bf16 %v99, %v99
  %v101 = vpack.c.bf16 %v95, %v95
  %v102 = vpack.c.bf16 %v96, %v96
  %v103 = vpack.c.bf16 %v97, %v97
  %v104 = vpack.c.bf16 %v98, %v98
  %105 = vrot.lane.b32.xlu0 %v17, 16
  %v106 = vpop.permute.xlu0 %105
  %107 = vrot.lane.b32.xlu0 %v18, 16
  %v108 = vpop.permute.xlu0 %107
  %109 = vrot.lane.b32.xlu0 %v19, 16
  %v110 = vpop.permute.xlu0 %109
  %111 = vrot.lane.b32.xlu0 %v20, 16
  %v112 = vpop.permute.xlu0 %111
  %vm113 = vcmp.lt.s32.totalorder %v22, 16
  %v114 = vsel %vm113, %v110, %v112
  %v115 = vsel %vm113, %v108, %v110
  %v116 = vsel %vm113, %v106, %v108
  %v117 = vsel %vm113, %v112, %v106
  %v118 = vsel %vm63, 1, 0
  %v119 = vsel %vm64, 1, 0
  %v120 = vsel %vm65, 1, 0
  %v121 = vsel %vm66, 1, 0
  %vm122 = vcmp.eq.s32.totalorder %v118, 1
  %vm123 = vcmp.eq.s32.totalorder %v119, 1
  %vm124 = vcmp.eq.s32.totalorder %v120, 1
  %vm125 = vcmp.eq.s32.totalorder %v121, 1
  %v126 = vsel %vm122, %v117, 0.0
  %v127 = vsel %vm123, %v116, 0.0
  %v128 = vsel %vm124, %v115, 0.0
  %v129 = vsel %vm125, %v114, 0.0
  %v130 = vld [vmem:[%s1 + $0x8] sm:$0xff]
  %v131 = vpack.c.bf16 %v130, %v130
  %v132 = vpack.c.bf16 %v126, %v126
  %v133 = vpack.c.bf16 %v127, %v127
  %v134 = vpack.c.bf16 %v128, %v128
  %v135 = vpack.c.bf16 %v129, %v129
  %vm136 = vcmask 64512
  %v138 = vsel %vm136, %v131, 0
  %vm140 = vcmask 1043456
  %v142 = vsel %vm140, %v132, 0
  %v145 = vsel %vm140, %v133, 0
  %v148 = vsel %vm140, %v134, 0
  %v151 = vsel %vm140, %v135, 0
  %153 = vmatpush.bf16.msra.mxu0 0
  %154 = vmatpush.bf16.msra.mxu0 0
  %155 = vmatpush.bf16.msra.mxu0 0
  %156 = vmatpush.bf16.msra.mxu0 0
  %157 = vmatpush.bf16.msra.mxu0 0
  %158 = vmatpush.bf16.msra.mxu0 0
  %159 = vmatpush.bf16.msra.mxu0 0
  %160 = vmatpush.bf16.msra.mxu0 %v142
  %161 = vmatmul.bf16.gmra.mxu0 %v138
  %v162 = vpop.f32.mrf.mxu0
  %v163 = vadd.f32 0.0, %v162
  %v164 = vpop.f32.mrf.mxu0
  %165 = vdwg.mxu0
  %166 = vmatpush.bf16.msra.mxu0 0
  %167 = vmatpush.bf16.msra.mxu0 0
  %168 = vmatpush.bf16.msra.mxu0 0
  %169 = vmatpush.bf16.msra.mxu0 0
  %170 = vmatpush.bf16.msra.mxu0 0
  %171 = vmatpush.bf16.msra.mxu0 0
  %172 = vmatpush.bf16.msra.mxu0 0
  %173 = vmatpush.bf16.msra.mxu0 %v145
  %174 = vmatmul.bf16.gmra.mxu0 %v138
  %v175 = vpop.f32.mrf.mxu0
  %v176 = vadd.f32 0.0, %v175
  %v177 = vpop.f32.mrf.mxu0
  %178 = vdwg.mxu0
  %179 = vmatpush.bf16.msra.mxu0 0
  %180 = vmatpush.bf16.msra.mxu0 0
  %181 = vmatpush.bf16.msra.mxu0 0
  %182 = vmatpush.bf16.msra.mxu0 0
  %183 = vmatpush.bf16.msra.mxu0 0
  %184 = vmatpush.bf16.msra.mxu0 0
  %185 = vmatpush.bf16.msra.mxu0 0
  %186 = vmatpush.bf16.msra.mxu0 %v148
  %187 = vmatmul.bf16.gmra.mxu0 %v138
  %v188 = vpop.f32.mrf.mxu0
  %v189 = vadd.f32 0.0, %v188
  %v190 = vpop.f32.mrf.mxu0
  %191 = vdwg.mxu0
  %192 = vmatpush.bf16.msra.mxu0 0
  %193 = vmatpush.bf16.msra.mxu0 0
  %194 = vmatpush.bf16.msra.mxu0 0
  %195 = vmatpush.bf16.msra.mxu0 0
  %196 = vmatpush.bf16.msra.mxu0 0
  %197 = vmatpush.bf16.msra.mxu0 0
  %198 = vmatpush.bf16.msra.mxu0 0
  %199 = vmatpush.bf16.msra.mxu0 %v151
  %200 = vmatmul.bf16.gmra.mxu0 %v138
  %v201 = vpop.f32.mrf.mxu0
  %v202 = vadd.f32 0.0, %v201
  %v203 = vpop.f32.mrf.mxu0
  %204 = vdwg.mxu0
  %v206 = vsel %vm136, %v100, 0
  %v209 = vsel %vm140, %v101, 0
  %v212 = vsel %vm140, %v102, 0
  %v215 = vsel %vm140, %v103, 0
  %v218 = vsel %vm140, %v104, 0
  %220 = vmatpush.bf16.msra.mxu0 0
  %221 = vmatpush.bf16.msra.mxu0 0
  %222 = vmatpush.bf16.msra.mxu0 0
  %223 = vmatpush.bf16.msra.mxu0 0
  %224 = vmatpush.bf16.msra.mxu0 0
  %225 = vmatpush.bf16.msra.mxu0 0
  %226 = vmatpush.bf16.msra.mxu0 0
  %227 = vmatpush.bf16.msra.mxu0 %v209
  %228 = vmatmul.bf16.gmra.mxu0 %v206
  %v229 = vpop.f32.mrf.mxu0
  %v230 = vadd.f32 %v163, %v229
  %v231 = vpop.f32.mrf.mxu0
  %232 = vdwg.mxu0
  %233 = vmatpush.bf16.msra.mxu0 0
  %234 = vmatpush.bf16.msra.mxu0 0
  %235 = vmatpush.bf16.msra.mxu0 0
  %236 = vmatpush.bf16.msra.mxu0 0
  %237 = vmatpush.bf16.msra.mxu0 0
  %238 = vmatpush.bf16.msra.mxu0 0
  %239 = vmatpush.bf16.msra.mxu0 0
  %240 = vmatpush.bf16.msra.mxu0 %v212
  %241 = vmatmul.bf16.gmra.mxu0 %v206
  %v242 = vpop.f32.mrf.mxu0
  %v243 = vadd.f32 %v176, %v242
  %v244 = vpop.f32.mrf.mxu0
  %245 = vdwg.mxu0
  %246 = vmatpush.bf16.msra.mxu0 0
  %247 = vmatpush.bf16.msra.mxu0 0
  %248 = vmatpush.bf16.msra.mxu0 0
  %249 = vmatpush.bf16.msra.mxu0 0
  %250 = vmatpush.bf16.msra.mxu0 0
  %251 = vmatpush.bf16.msra.mxu0 0
  %252 = vmatpush.bf16.msra.mxu0 0
  %253 = vmatpush.bf16.msra.mxu0 %v215
  %254 = vmatmul.bf16.gmra.mxu0 %v206
  %v255 = vpop.f32.mrf.mxu0
  %v256 = vadd.f32 %v189, %v255
  %v257 = vpop.f32.mrf.mxu0
  %258 = vdwg.mxu0
  %259 = vmatpush.bf16.msra.mxu0 0
  %260 = vmatpush.bf16.msra.mxu0 0
  %261 = vmatpush.bf16.msra.mxu0 0
  %262 = vmatpush.bf16.msra.mxu0 0
  %263 = vmatpush.bf16.msra.mxu0 0
  %264 = vmatpush.bf16.msra.mxu0 0
  %265 = vmatpush.bf16.msra.mxu0 0
  %266 = vmatpush.bf16.msra.mxu0 %v218
  %267 = vmatmul.bf16.gmra.mxu0 %v206
  %v268 = vpop.f32.mrf.mxu0
  %v269 = vadd.f32 %v202, %v268
  %v270 = vpop.f32.mrf.mxu0
  %271 = vdwg.mxu0
  %272 = vrot.lane.b32.xlu0 %v17, 15
  %v273 = vpop.permute.xlu0 %272
  %274 = vrot.lane.b32.xlu0 %v18, 15
  %v275 = vpop.permute.xlu0 %274
  %276 = vrot.lane.b32.xlu0 %v19, 15
  %v277 = vpop.permute.xlu0 %276
  %278 = vrot.lane.b32.xlu0 %v20, 15
  %v279 = vpop.permute.xlu0 %278
  %vm280 = vcmp.lt.s32.totalorder %v22, 15
  %v281 = vsel %vm280, %v277, %v279
  %v282 = vsel %vm280, %v275, %v277
  %v283 = vsel %vm280, %v273, %v275
  %v284 = vsel %vm280, %v279, %v273
  %v285 = vadd.s32 %v26, 1
  %v286 = vadd.s32 %v27, 1
  %v287 = vadd.s32 %v28, 1
  %v288 = vadd.s32 %v29, 1
  %vm289 = vcmp.ge.s32.totalorder %v285, 0
  %vm290 = vcmp.ge.s32.totalorder %v286, 0
  %vm291 = vcmp.ge.s32.totalorder %v287, 0
  %vm292 = vcmp.ge.s32.totalorder %v288, 0
  %vm293 = vcmp.lt.s32.totalorder %v285, 16
  %vm294 = vcmp.lt.s32.totalorder %v286, 16
  %vm295 = vcmp.lt.s32.totalorder %v287, 16
  %vm296 = vcmp.lt.s32.totalorder %v288, 16
  %vm297 = vmand %vm289, %vm293
  %vm298 = vmand %vm290, %vm294
  %vm299 = vmand %vm291, %vm295
  %vm300 = vmand %vm292, %vm296
  %vm301 = vmand %vm63, %vm297
  %vm302 = vmand %vm64, %vm298
  %vm303 = vmand %vm65, %vm299
  %vm304 = vmand %vm66, %vm300
  %v305 = vsel %vm301, 1, 0
  %v306 = vsel %vm302, 1, 0
  %v307 = vsel %vm303, 1, 0
  %v308 = vsel %vm304, 1, 0
  %vm309 = vcmp.eq.s32.totalorder %v305, 1
  %vm310 = vcmp.eq.s32.totalorder %v306, 1
  %vm311 = vcmp.eq.s32.totalorder %v307, 1
  %vm312 = vcmp.eq.s32.totalorder %v308, 1
  %v313 = vsel %vm309, %v284, 0.0
  %v314 = vsel %vm310, %v283, 0.0
  %v315 = vsel %vm311, %v282, 0.0
  %v316 = vsel %vm312, %v281, 0.0
  %v317 = vld [vmem:[%s1 + $0x10] sm:$0xff]
  %v318 = vpack.c.bf16 %v317, %v317
  %v319 = vpack.c.bf16 %v313, %v313
  %v320 = vpack.c.bf16 %v314, %v314
  %v321 = vpack.c.bf16 %v315, %v315
  %v322 = vpack.c.bf16 %v316, %v316
  %v324 = vsel %vm136, %v318, 0
  %v327 = vsel %vm140, %v319, 0
  %v330 = vsel %vm140, %v320, 0
  %v333 = vsel %vm140, %v321, 0
  %v336 = vsel %vm140, %v322, 0
  %338 = vmatpush.bf16.msra.mxu0 0
  %339 = vmatpush.bf16.msra.mxu0 0
  %340 = vmatpush.bf16.msra.mxu0 0
  %341 = vmatpush.bf16.msra.mxu0 0
  %342 = vmatpush.bf16.msra.mxu0 0
  %343 = vmatpush.bf16.msra.mxu0 0
  %344 = vmatpush.bf16.msra.mxu0 0
  %345 = vmatpush.bf16.msra.mxu0 %v327
  %346 = vmatmul.bf16.gmra.mxu0 %v324
  %v347 = vpop.f32.mrf.mxu0
  %v348 = vadd.f32 0.0, %v347
  %v349 = vpop.f32.mrf.mxu0
  %350 = vdwg.mxu0
  %351 = vmatpush.bf16.msra.mxu0 0
  %352 = vmatpush.bf16.msra.mxu0 0
  %353 = vmatpush.bf16.msra.mxu0 0
  %354 = vmatpush.bf16.msra.mxu0 0
  %355 = vmatpush.bf16.msra.mxu0 0
  %356 = vmatpush.bf16.msra.mxu0 0
  %357 = vmatpush.bf16.msra.mxu0 0
  %358 = vmatpush.bf16.msra.mxu0 %v330
  %359 = vmatmul.bf16.gmra.mxu0 %v324
  %v360 = vpop.f32.mrf.mxu0
  %v361 = vadd.f32 0.0, %v360
  %v362 = vpop.f32.mrf.mxu0
  %363 = vdwg.mxu0
  %364 = vmatpush.bf16.msra.mxu0 0
  %365 = vmatpush.bf16.msra.mxu0 0
  %366 = vmatpush.bf16.msra.mxu0 0
  %367 = vmatpush.bf16.msra.mxu0 0
  %368 = vmatpush.bf16.msra.mxu0 0
  %369 = vmatpush.bf16.msra.mxu0 0
  %370 = vmatpush.bf16.msra.mxu0 0
  %371 = vmatpush.bf16.msra.mxu0 %v333
  %372 = vmatmul.bf16.gmra.mxu0 %v324
  %v373 = vpop.f32.mrf.mxu0
  %v374 = vadd.f32 0.0, %v373
  %v375 = vpop.f32.mrf.mxu0
  %376 = vdwg.mxu0
  %377 = vmatpush.bf16.msra.mxu0 0
  %378 = vmatpush.bf16.msra.mxu0 0
  %379 = vmatpush.bf16.msra.mxu0 0
  %380 = vmatpush.bf16.msra.mxu0 0
  %381 = vmatpush.bf16.msra.mxu0 0
  %382 = vmatpush.bf16.msra.mxu0 0
  %383 = vmatpush.bf16.msra.mxu0 0
  %384 = vmatpush.bf16.msra.mxu0 %v336
  %385 = vmatmul.bf16.gmra.mxu0 %v324
  %v386 = vpop.f32.mrf.mxu0
  %v387 = vadd.f32 0.0, %v386
  %v388 = vpop.f32.mrf.mxu0
  %389 = vdwg.mxu0
  %v390 = vadd.f32 %v230, %v348
  %v391 = vadd.f32 %v243, %v361
  %v392 = vadd.f32 %v256, %v374
  %v393 = vadd.f32 %v269, %v387
  %394 = vrot.lane.b32.xlu0 %v17, 1
  %v395 = vpop.permute.xlu0 %394
  %396 = vrot.lane.b32.xlu0 %v18, 1
  %v397 = vpop.permute.xlu0 %396
  %398 = vrot.lane.b32.xlu0 %v19, 1
  %v399 = vpop.permute.xlu0 %398
  %400 = vrot.lane.b32.xlu0 %v20, 1
  %v401 = vpop.permute.xlu0 %400
  %vm402 = vcmp.lt.s32.totalorder %v22, 1
  %v403 = vsel %vm402, %v399, %v401
  %v404 = vsel %vm402, %v397, %v399
  %v405 = vsel %vm402, %v395, %v397
  %v406 = vsel %vm402, %v401, %v395
  %v407 = vsel %vm79, 1, 0
  %v408 = vsel %vm80, 1, 0
  %v409 = vsel %vm81, 1, 0
  %v410 = vsel %vm82, 1, 0
  %vm411 = vcmp.eq.s32.totalorder %v407, 1
  %vm412 = vcmp.eq.s32.totalorder %v408, 1
  %vm413 = vcmp.eq.s32.totalorder %v409, 1
  %vm414 = vcmp.eq.s32.totalorder %v410, 1
  %v415 = vsel %vm411, %v406, 0.0
  %v416 = vsel %vm412, %v405, 0.0
  %v417 = vsel %vm413, %v404, 0.0
  %v418 = vsel %vm414, %v403, 0.0
  %v419 = vld [vmem:[%s1 + $0x18] sm:$0xff]
  %v420 = vpack.c.bf16 %v419, %v419
  %v421 = vpack.c.bf16 %v415, %v415
  %v422 = vpack.c.bf16 %v416, %v416
  %v423 = vpack.c.bf16 %v417, %v417
  %v424 = vpack.c.bf16 %v418, %v418
  %v426 = vsel %vm136, %v420, 0
  %v429 = vsel %vm140, %v421, 0
  %v432 = vsel %vm140, %v422, 0
  %v435 = vsel %vm140, %v423, 0
  %v438 = vsel %vm140, %v424, 0
  %440 = vmatpush.bf16.msra.mxu0 0
  %441 = vmatpush.bf16.msra.mxu0 0
  %442 = vmatpush.bf16.msra.mxu0 0
  %443 = vmatpush.bf16.msra.mxu0 0
  %444 = vmatpush.bf16.msra.mxu0 0
  %445 = vmatpush.bf16.msra.mxu0 0
  %446 = vmatpush.bf16.msra.mxu0 0
  %447 = vmatpush.bf16.msra.mxu0 %v429
  %448 = vmatmul.bf16.gmra.mxu0 %v426
  %v449 = vpop.f32.mrf.mxu0
  %v450 = vadd.f32 0.0, %v449
  %v451 = vpop.f32.mrf.mxu0
  %452 = vdwg.mxu0
  %453 = vmatpush.bf16.msra.mxu0 0
  %454 = vmatpush.bf16.msra.mxu0 0
  %455 = vmatpush.bf16.msra.mxu0 0
  %456 = vmatpush.bf16.msra.mxu0 0
  %457 = vmatpush.bf16.msra.mxu0 0
  %458 = vmatpush.bf16.msra.mxu0 0
  %459 = vmatpush.bf16.msra.mxu0 0
  %460 = vmatpush.bf16.msra.mxu0 %v432
  %461 = vmatmul.bf16.gmra.mxu0 %v426
  %v462 = vpop.f32.mrf.mxu0
  %v463 = vadd.f32 0.0, %v462
  %v464 = vpop.f32.mrf.mxu0
  %465 = vdwg.mxu0
  %466 = vmatpush.bf16.msra.mxu0 0
  %467 = vmatpush.bf16.msra.mxu0 0
  %468 = vmatpush.bf16.msra.mxu0 0
  %469 = vmatpush.bf16.msra.mxu0 0
  %470 = vmatpush.bf16.msra.mxu0 0
  %471 = vmatpush.bf16.msra.mxu0 0
  %472 = vmatpush.bf16.msra.mxu0 0
  %473 = vmatpush.bf16.msra.mxu0 %v435
  %474 = vmatmul.bf16.gmra.mxu0 %v426
  %v475 = vpop.f32.mrf.mxu0
  %v476 = vadd.f32 0.0, %v475
  %v477 = vpop.f32.mrf.mxu0
  %478 = vdwg.mxu0
  %479 = vmatpush.bf16.msra.mxu0 0
  %480 = vmatpush.bf16.msra.mxu0 0
  %481 = vmatpush.bf16.msra.mxu0 0
  %482 = vmatpush.bf16.msra.mxu0 0
  %483 = vmatpush.bf16.msra.mxu0 0
  %484 = vmatpush.bf16.msra.mxu0 0
  %485 = vmatpush.bf16.msra.mxu0 0
  %486 = vmatpush.bf16.msra.mxu0 %v438
  %487 = vmatmul.bf16.gmra.mxu0 %v426
  %v488 = vpop.f32.mrf.mxu0
  %v489 = vadd.f32 0.0, %v488
  %v490 = vpop.f32.mrf.mxu0
  %491 = vdwg.mxu0
  %v492 = vadd.f32 %v390, %v450
  %v493 = vadd.f32 %v391, %v463
  %v494 = vadd.f32 %v392, %v476
  %v495 = vadd.f32 %v393, %v489
  %v496 = vld [vmem:[%s1 + $0x20] sm:$0xff]
  %v497 = vpack.c.bf16 %v496, %v496
  %v500 = vunpack.c.l.b16 %v15
  %v501 = vunpack.c.h.b16 %v15
  %v502 = vunpack.c.l.b16 %v16
  %v503 = vunpack.c.h.b16 %v16
  %v504 = vpack.c.b16 %v500, %v500
  %v505 = vpack.c.b16 %v501, %v501
  %v506 = vpack.c.b16 %v502, %v502
  %v507 = vpack.c.b16 %v503, %v503
  %v509 = vsel %vm136, %v497, 0
  %v512 = vsel %vm140, %v504, 0
  %v515 = vsel %vm140, %v505, 0
  %v518 = vsel %vm140, %v506, 0
  %v521 = vsel %vm140, %v507, 0
  %523 = vmatpush.bf16.msra.mxu0 0
  %524 = vmatpush.bf16.msra.mxu0 0
  %525 = vmatpush.bf16.msra.mxu0 0
  %526 = vmatpush.bf16.msra.mxu0 0
  %527 = vmatpush.bf16.msra.mxu0 0
  %528 = vmatpush.bf16.msra.mxu0 0
  %529 = vmatpush.bf16.msra.mxu0 0
  %530 = vmatpush.bf16.msra.mxu0 %v512
  %531 = vmatmul.bf16.gmra.mxu0 %v509
  %v532 = vpop.f32.mrf.mxu0
  %v533 = vadd.f32 0.0, %v532
  %v534 = vpop.f32.mrf.mxu0
  %535 = vdwg.mxu0
  %536 = vmatpush.bf16.msra.mxu0 0
  %537 = vmatpush.bf16.msra.mxu0 0
  %538 = vmatpush.bf16.msra.mxu0 0
  %539 = vmatpush.bf16.msra.mxu0 0
  %540 = vmatpush.bf16.msra.mxu0 0
  %541 = vmatpush.bf16.msra.mxu0 0
  %542 = vmatpush.bf16.msra.mxu0 0
  %543 = vmatpush.bf16.msra.mxu0 %v515
  %544 = vmatmul.bf16.gmra.mxu0 %v509
  %v545 = vpop.f32.mrf.mxu0
  %v546 = vadd.f32 0.0, %v545
  %v547 = vpop.f32.mrf.mxu0
  %548 = vdwg.mxu0
  %549 = vmatpush.bf16.msra.mxu0 0
  %550 = vmatpush.bf16.msra.mxu0 0
  %551 = vmatpush.bf16.msra.mxu0 0
  %552 = vmatpush.bf16.msra.mxu0 0
  %553 = vmatpush.bf16.msra.mxu0 0
  %554 = vmatpush.bf16.msra.mxu0 0
  %555 = vmatpush.bf16.msra.mxu0 0
  %556 = vmatpush.bf16.msra.mxu0 %v518
  %557 = vmatmul.bf16.gmra.mxu0 %v509
  %v558 = vpop.f32.mrf.mxu0
  %v559 = vadd.f32 0.0, %v558
  %v560 = vpop.f32.mrf.mxu0
  %561 = vdwg.mxu0
  %562 = vmatpush.bf16.msra.mxu0 0
  %563 = vmatpush.bf16.msra.mxu0 0
  %564 = vmatpush.bf16.msra.mxu0 0
  %565 = vmatpush.bf16.msra.mxu0 0
  %566 = vmatpush.bf16.msra.mxu0 0
  %567 = vmatpush.bf16.msra.mxu0 0
  %568 = vmatpush.bf16.msra.mxu0 0
  %569 = vmatpush.bf16.msra.mxu0 %v521
  %570 = vmatmul.bf16.gmra.mxu0 %v509
  %v571 = vpop.f32.mrf.mxu0
  %v572 = vadd.f32 0.0, %v571
  %v573 = vpop.f32.mrf.mxu0
  %574 = vdwg.mxu0
  %v575 = vadd.f32 %v492, %v533
  %v576 = vadd.f32 %v493, %v546
  %v577 = vadd.f32 %v494, %v559
  %v578 = vadd.f32 %v495, %v572
  %579 = vrot.lane.b32.xlu0 %v17, 127
  %v580 = vpop.permute.xlu0 %579
  %581 = vrot.lane.b32.xlu0 %v18, 127
  %v582 = vpop.permute.xlu0 %581
  %583 = vrot.lane.b32.xlu0 %v19, 127
  %v584 = vpop.permute.xlu0 %583
  %585 = vrot.lane.b32.xlu0 %v20, 127
  %v586 = vpop.permute.xlu0 %585
  %vm587 = vcmp.lt.s32.totalorder %v22, 127
  %v588 = vsel %vm587, %v584, %v586
  %v589 = vsel %vm587, %v582, %v584
  %v590 = vsel %vm587, %v580, %v582
  %v591 = vsel %vm587, %v586, %v580
  %v592 = vsel %vm297, 1, 0
  %v593 = vsel %vm298, 1, 0
  %v594 = vsel %vm299, 1, 0
  %v595 = vsel %vm300, 1, 0
  %vm596 = vcmp.eq.s32.totalorder %v592, 1
  %vm597 = vcmp.eq.s32.totalorder %v593, 1
  %vm598 = vcmp.eq.s32.totalorder %v594, 1
  %vm599 = vcmp.eq.s32.totalorder %v595, 1
  %v600 = vsel %vm596, %v590, 0.0
  %v601 = vsel %vm597, %v589, 0.0
  %v602 = vsel %vm598, %v588, 0.0
  %v603 = vsel %vm599, %v591, 0.0
  %v604 = vld [vmem:[%s1 + $0x28] sm:$0xff]
  %v605 = vpack.c.bf16 %v604, %v604
  %v606 = vpack.c.bf16 %v600, %v600
  %v607 = vpack.c.bf16 %v601, %v601
  %v608 = vpack.c.bf16 %v602, %v602
  %v609 = vpack.c.bf16 %v603, %v603
  %v611 = vsel %vm136, %v605, 0
  %v614 = vsel %vm140, %v606, 0
  %v617 = vsel %vm140, %v607, 0
  %v620 = vsel %vm140, %v608, 0
  %v623 = vsel %vm140, %v609, 0
  %625 = vmatpush.bf16.msra.mxu0 0
  %626 = vmatpush.bf16.msra.mxu0 0
  %627 = vmatpush.bf16.msra.mxu0 0
  %628 = vmatpush.bf16.msra.mxu0 0
  %629 = vmatpush.bf16.msra.mxu0 0
  %630 = vmatpush.bf16.msra.mxu0 0
  %631 = vmatpush.bf16.msra.mxu0 0
  %632 = vmatpush.bf16.msra.mxu0 %v614
  %633 = vmatmul.bf16.gmra.mxu0 %v611
  %v634 = vpop.f32.mrf.mxu0
  %v635 = vadd.f32 0.0, %v634
  %v636 = vpop.f32.mrf.mxu0
  %637 = vdwg.mxu0
  %638 = vmatpush.bf16.msra.mxu0 0
  %639 = vmatpush.bf16.msra.mxu0 0
  %640 = vmatpush.bf16.msra.mxu0 0
  %641 = vmatpush.bf16.msra.mxu0 0
  %642 = vmatpush.bf16.msra.mxu0 0
  %643 = vmatpush.bf16.msra.mxu0 0
  %644 = vmatpush.bf16.msra.mxu0 0
  %645 = vmatpush.bf16.msra.mxu0 %v617
  %646 = vmatmul.bf16.gmra.mxu0 %v611
  %v647 = vpop.f32.mrf.mxu0
  %v648 = vadd.f32 0.0, %v647
  %v649 = vpop.f32.mrf.mxu0
  %650 = vdwg.mxu0
  %651 = vmatpush.bf16.msra.mxu0 0
  %652 = vmatpush.bf16.msra.mxu0 0
  %653 = vmatpush.bf16.msra.mxu0 0
  %654 = vmatpush.bf16.msra.mxu0 0
  %655 = vmatpush.bf16.msra.mxu0 0
  %656 = vmatpush.bf16.msra.mxu0 0
  %657 = vmatpush.bf16.msra.mxu0 0
  %658 = vmatpush.bf16.msra.mxu0 %v620
  %659 = vmatmul.bf16.gmra.mxu0 %v611
  %v660 = vpop.f32.mrf.mxu0
  %v661 = vadd.f32 0.0, %v660
  %v662 = vpop.f32.mrf.mxu0
  %663 = vdwg.mxu0
  %664 = vmatpush.bf16.msra.mxu0 0
  %665 = vmatpush.bf16.msra.mxu0 0
  %666 = vmatpush.bf16.msra.mxu0 0
  %667 = vmatpush.bf16.msra.mxu0 0
  %668 = vmatpush.bf16.msra.mxu0 0
  %669 = vmatpush.bf16.msra.mxu0 0
  %670 = vmatpush.bf16.msra.mxu0 0
  %671 = vmatpush.bf16.msra.mxu0 %v623
  %672 = vmatmul.bf16.gmra.mxu0 %v611
  %v673 = vpop.f32.mrf.mxu0
  %v674 = vadd.f32 0.0, %v673
  %v675 = vpop.f32.mrf.mxu0
  %676 = vdwg.mxu0
  %v677 = vadd.f32 %v575, %v635
  %v678 = vadd.f32 %v576, %v648
  %v679 = vadd.f32 %v577, %v661
  %v680 = vadd.f32 %v578, %v674
  %681 = vrot.lane.b32.xlu0 %v17, 113
  %v682 = vpop.permute.xlu0 %681
  %683 = vrot.lane.b32.xlu0 %v18, 113
  %v684 = vpop.permute.xlu0 %683
  %685 = vrot.lane.b32.xlu0 %v19, 113
  %v686 = vpop.permute.xlu0 %685
  %687 = vrot.lane.b32.xlu0 %v20, 113
  %v688 = vpop.permute.xlu0 %687
  %vm689 = vcmp.lt.s32.totalorder %v22, 113
  %v690 = vsel %vm689, %v686, %v688
  %v691 = vsel %vm689, %v684, %v686
  %v692 = vsel %vm689, %v682, %v684
  %v693 = vsel %vm689, %v688, %v682
  %v694 = vadd.s32 %v34, 1
  %v695 = vadd.s32 %v35, 1
  %v696 = vadd.s32 %v36, 1
  %v697 = vadd.s32 %v37, 1
  %vm698 = vcmp.ge.s32.totalorder %v694, 0
  %vm699 = vcmp.ge.s32.totalorder %v695, 0
  %vm700 = vcmp.ge.s32.totalorder %v696, 0
  %vm701 = vcmp.ge.s32.totalorder %v697, 0
  %vm702 = vcmp.lt.s32.totalorder %v694, 16
  %vm703 = vcmp.lt.s32.totalorder %v695, 16
  %vm704 = vcmp.lt.s32.totalorder %v696, 16
  %vm705 = vcmp.lt.s32.totalorder %v697, 16
  %vm706 = vmand %vm698, %vm702
  %vm707 = vmand %vm699, %vm703
  %vm708 = vmand %vm700, %vm704
  %vm709 = vmand %vm701, %vm705
  %vm710 = vmand %vm706, %vm79
  %vm711 = vmand %vm707, %vm80
  %vm712 = vmand %vm708, %vm81
  %vm713 = vmand %vm709, %vm82
  %v714 = vsel %vm710, 1, 0
  %v715 = vsel %vm711, 1, 0
  %v716 = vsel %vm712, 1, 0
  %v717 = vsel %vm713, 1, 0
  %vm718 = vcmp.eq.s32.totalorder %v714, 1
  %vm719 = vcmp.eq.s32.totalorder %v715, 1
  %vm720 = vcmp.eq.s32.totalorder %v716, 1
  %vm721 = vcmp.eq.s32.totalorder %v717, 1
  %v722 = vsel %vm718, %v692, 0.0
  %v723 = vsel %vm719, %v691, 0.0
  %v724 = vsel %vm720, %v690, 0.0
  %v725 = vsel %vm721, %v693, 0.0
  %v726 = vld [vmem:[%s1 + $0x30] sm:$0xff]
  %v727 = vpack.c.bf16 %v726, %v726
  %v728 = vpack.c.bf16 %v722, %v722
  %v729 = vpack.c.bf16 %v723, %v723
  %v730 = vpack.c.bf16 %v724, %v724
  %v731 = vpack.c.bf16 %v725, %v725
  %v733 = vsel %vm136, %v727, 0
  %v736 = vsel %vm140, %v728, 0
  %v739 = vsel %vm140, %v729, 0
  %v742 = vsel %vm140, %v730, 0
  %v745 = vsel %vm140, %v731, 0
  %747 = vmatpush.bf16.msra.mxu0 0
  %748 = vmatpush.bf16.msra.mxu0 0
  %749 = vmatpush.bf16.msra.mxu0 0
  %750 = vmatpush.bf16.msra.mxu0 0
  %751 = vmatpush.bf16.msra.mxu0 0
  %752 = vmatpush.bf16.msra.mxu0 0
  %753 = vmatpush.bf16.msra.mxu0 0
  %754 = vmatpush.bf16.msra.mxu0 %v736
  %755 = vmatmul.bf16.gmra.mxu0 %v733
  %v756 = vpop.f32.mrf.mxu0
  %v757 = vadd.f32 0.0, %v756
  %v758 = vpop.f32.mrf.mxu0
  %759 = vdwg.mxu0
  %760 = vmatpush.bf16.msra.mxu0 0
  %761 = vmatpush.bf16.msra.mxu0 0
  %762 = vmatpush.bf16.msra.mxu0 0
  %763 = vmatpush.bf16.msra.mxu0 0
  %764 = vmatpush.bf16.msra.mxu0 0
  %765 = vmatpush.bf16.msra.mxu0 0
  %766 = vmatpush.bf16.msra.mxu0 0
  %767 = vmatpush.bf16.msra.mxu0 %v739
  %768 = vmatmul.bf16.gmra.mxu0 %v733
  %v769 = vpop.f32.mrf.mxu0
  %v770 = vadd.f32 0.0, %v769
  %v771 = vpop.f32.mrf.mxu0
  %772 = vdwg.mxu0
  %773 = vmatpush.bf16.msra.mxu0 0
  %774 = vmatpush.bf16.msra.mxu0 0
  %775 = vmatpush.bf16.msra.mxu0 0
  %776 = vmatpush.bf16.msra.mxu0 0
  %777 = vmatpush.bf16.msra.mxu0 0
  %778 = vmatpush.bf16.msra.mxu0 0
  %779 = vmatpush.bf16.msra.mxu0 0
  %780 = vmatpush.bf16.msra.mxu0 %v742
  %781 = vmatmul.bf16.gmra.mxu0 %v733
  %v782 = vpop.f32.mrf.mxu0
  %v783 = vadd.f32 0.0, %v782
  %v784 = vpop.f32.mrf.mxu0
  %785 = vdwg.mxu0
  %786 = vmatpush.bf16.msra.mxu0 0
  %787 = vmatpush.bf16.msra.mxu0 0
  %788 = vmatpush.bf16.msra.mxu0 0
  %789 = vmatpush.bf16.msra.mxu0 0
  %790 = vmatpush.bf16.msra.mxu0 0
  %791 = vmatpush.bf16.msra.mxu0 0
  %792 = vmatpush.bf16.msra.mxu0 0
  %793 = vmatpush.bf16.msra.mxu0 %v745
  %794 = vmatmul.bf16.gmra.mxu0 %v733
  %v795 = vpop.f32.mrf.mxu0
  %v796 = vadd.f32 0.0, %v795
  %v797 = vpop.f32.mrf.mxu0
  %798 = vdwg.mxu0
  %v799 = vadd.f32 %v677, %v757
  %v800 = vadd.f32 %v678, %v770
  %v801 = vadd.f32 %v679, %v783
  %v802 = vadd.f32 %v680, %v796
  %803 = vrot.lane.b32.xlu0 %v17, 112
  %v804 = vpop.permute.xlu0 %803
  %805 = vrot.lane.b32.xlu0 %v18, 112
  %v806 = vpop.permute.xlu0 %805
  %807 = vrot.lane.b32.xlu0 %v19, 112
  %v808 = vpop.permute.xlu0 %807
  %809 = vrot.lane.b32.xlu0 %v20, 112
  %v810 = vpop.permute.xlu0 %809
  %vm811 = vcmp.lt.s32.totalorder %v22, 112
  %v812 = vsel %vm811, %v808, %v810
  %v813 = vsel %vm811, %v806, %v808
  %v814 = vsel %vm811, %v804, %v806
  %v815 = vsel %vm811, %v810, %v804
  %v816 = vsel %vm706, 1, 0
  %v817 = vsel %vm707, 1, 0
  %v818 = vsel %vm708, 1, 0
  %v819 = vsel %vm709, 1, 0
  %vm820 = vcmp.eq.s32.totalorder %v816, 1
  %vm821 = vcmp.eq.s32.totalorder %v817, 1
  %vm822 = vcmp.eq.s32.totalorder %v818, 1
  %vm823 = vcmp.eq.s32.totalorder %v819, 1
  %v824 = vsel %vm820, %v814, 0.0
  %v825 = vsel %vm821, %v813, 0.0
  %v826 = vsel %vm822, %v812, 0.0
  %v827 = vsel %vm823, %v815, 0.0
  %v828 = vld [vmem:[%s1 + $0x38] sm:$0xff]
  %v829 = vpack.c.bf16 %v828, %v828
  %v830 = vpack.c.bf16 %v824, %v824
  %v831 = vpack.c.bf16 %v825, %v825
  %v832 = vpack.c.bf16 %v826, %v826
  %v833 = vpack.c.bf16 %v827, %v827
  %v835 = vsel %vm136, %v829, 0
  %v838 = vsel %vm140, %v830, 0
  %v841 = vsel %vm140, %v831, 0
  %v844 = vsel %vm140, %v832, 0
  %v847 = vsel %vm140, %v833, 0
  %849 = vmatpush.bf16.msra.mxu0 0
  %850 = vmatpush.bf16.msra.mxu0 0
  %851 = vmatpush.bf16.msra.mxu0 0
  %852 = vmatpush.bf16.msra.mxu0 0
  %853 = vmatpush.bf16.msra.mxu0 0
  %854 = vmatpush.bf16.msra.mxu0 0
  %855 = vmatpush.bf16.msra.mxu0 0
  %856 = vmatpush.bf16.msra.mxu0 %v838
  %857 = vmatmul.bf16.gmra.mxu0 %v835
  %v858 = vpop.f32.mrf.mxu0
  %v859 = vadd.f32 0.0, %v858
  %v860 = vpop.f32.mrf.mxu0
  %861 = vdwg.mxu0
  %862 = vmatpush.bf16.msra.mxu0 0
  %863 = vmatpush.bf16.msra.mxu0 0
  %864 = vmatpush.bf16.msra.mxu0 0
  %865 = vmatpush.bf16.msra.mxu0 0
  %866 = vmatpush.bf16.msra.mxu0 0
  %867 = vmatpush.bf16.msra.mxu0 0
  %868 = vmatpush.bf16.msra.mxu0 0
  %869 = vmatpush.bf16.msra.mxu0 %v841
  %870 = vmatmul.bf16.gmra.mxu0 %v835
  %v871 = vpop.f32.mrf.mxu0
  %v872 = vadd.f32 0.0, %v871
  %v873 = vpop.f32.mrf.mxu0
  %874 = vdwg.mxu0
  %875 = vmatpush.bf16.msra.mxu0 0
  %876 = vmatpush.bf16.msra.mxu0 0
  %877 = vmatpush.bf16.msra.mxu0 0
  %878 = vmatpush.bf16.msra.mxu0 0
  %879 = vmatpush.bf16.msra.mxu0 0
  %880 = vmatpush.bf16.msra.mxu0 0
  %881 = vmatpush.bf16.msra.mxu0 0
  %882 = vmatpush.bf16.msra.mxu0 %v844
  %883 = vmatmul.bf16.gmra.mxu0 %v835
  %v884 = vpop.f32.mrf.mxu0
  %v885 = vadd.f32 0.0, %v884
  %v886 = vpop.f32.mrf.mxu0
  %887 = vdwg.mxu0
  %888 = vmatpush.bf16.msra.mxu0 0
  %889 = vmatpush.bf16.msra.mxu0 0
  %890 = vmatpush.bf16.msra.mxu0 0
  %891 = vmatpush.bf16.msra.mxu0 0
  %892 = vmatpush.bf16.msra.mxu0 0
  %893 = vmatpush.bf16.msra.mxu0 0
  %894 = vmatpush.bf16.msra.mxu0 0
  %895 = vmatpush.bf16.msra.mxu0 %v847
  %896 = vmatmul.bf16.gmra.mxu0 %v835
  %v897 = vpop.f32.mrf.mxu0
  %v898 = vadd.f32 0.0, %v897
  %v899 = vpop.f32.mrf.mxu0
  %900 = vdwg.mxu0
  %v901 = vadd.f32 %v799, %v859
  %v902 = vadd.f32 %v800, %v872
  %v903 = vadd.f32 %v801, %v885
  %v904 = vadd.f32 %v802, %v898
  %905 = vrot.lane.b32.xlu0 %v17, 111
  %v906 = vpop.permute.xlu0 %905
  %907 = vrot.lane.b32.xlu0 %v18, 111
  %v908 = vpop.permute.xlu0 %907
  %909 = vrot.lane.b32.xlu0 %v19, 111
  %v910 = vpop.permute.xlu0 %909
  %911 = vrot.lane.b32.xlu0 %v20, 111
  %v912 = vpop.permute.xlu0 %911
  %vm913 = vcmp.lt.s32.totalorder %v22, 111
  %v914 = vsel %vm913, %v910, %v912
  %v915 = vsel %vm913, %v908, %v910
  %v916 = vsel %vm913, %v906, %v908
  %v917 = vsel %vm913, %v912, %v906
  %vm918 = vmand %vm706, %vm297
  %vm919 = vmand %vm707, %vm298
  %vm920 = vmand %vm708, %vm299
  %vm921 = vmand %vm709, %vm300
  %v922 = vsel %vm918, 1, 0
  %v923 = vsel %vm919, 1, 0
  %v924 = vsel %vm920, 1, 0
  %v925 = vsel %vm921, 1, 0
  %vm926 = vcmp.eq.s32.totalorder %v922, 1
  %vm927 = vcmp.eq.s32.totalorder %v923, 1
  %vm928 = vcmp.eq.s32.totalorder %v924, 1
  %vm929 = vcmp.eq.s32.totalorder %v925, 1
  %v930 = vsel %vm926, %v916, 0.0
  %v931 = vsel %vm927, %v915, 0.0
  %v932 = vsel %vm928, %v914, 0.0
  %v933 = vsel %vm929, %v917, 0.0
  %v934 = vld [vmem:[%s1 + $0x40] sm:$0xff]
  %v935 = vpack.c.bf16 %v934, %v934
  %v936 = vpack.c.bf16 %v930, %v930
  %v937 = vpack.c.bf16 %v931, %v931
  %v938 = vpack.c.bf16 %v932, %v932
  %v939 = vpack.c.bf16 %v933, %v933
  %v941 = vsel %vm136, %v935, 0
  %v944 = vsel %vm140, %v936, 0
  %v947 = vsel %vm140, %v937, 0
  %v950 = vsel %vm140, %v938, 0
  %v953 = vsel %vm140, %v939, 0
  %955 = vmatpush.bf16.msra.mxu0 0
  %956 = vmatpush.bf16.msra.mxu0 0
  %957 = vmatpush.bf16.msra.mxu0 0
  %958 = vmatpush.bf16.msra.mxu0 0
  %959 = vmatpush.bf16.msra.mxu0 0
  %960 = vmatpush.bf16.msra.mxu0 0
  %961 = vmatpush.bf16.msra.mxu0 0
  %962 = vmatpush.bf16.msra.mxu0 %v944
  %963 = vmatmul.bf16.gmra.mxu0 %v941
  %v964 = vpop.f32.mrf.mxu0
  %v965 = vadd.f32 0.0, %v964
  %v966 = vpop.f32.mrf.mxu0
  %967 = vdwg.mxu0
  %968 = vmatpush.bf16.msra.mxu0 0
  %969 = vmatpush.bf16.msra.mxu0 0
  %970 = vmatpush.bf16.msra.mxu0 0
  %971 = vmatpush.bf16.msra.mxu0 0
  %972 = vmatpush.bf16.msra.mxu0 0
  %973 = vmatpush.bf16.msra.mxu0 0
  %974 = vmatpush.bf16.msra.mxu0 0
  %975 = vmatpush.bf16.msra.mxu0 %v947
  %976 = vmatmul.bf16.gmra.mxu0 %v941
  %v977 = vpop.f32.mrf.mxu0
  %v978 = vadd.f32 0.0, %v977
  %v979 = vpop.f32.mrf.mxu0
  %980 = vdwg.mxu0
  %981 = vmatpush.bf16.msra.mxu0 0
  %982 = vmatpush.bf16.msra.mxu0 0
  %983 = vmatpush.bf16.msra.mxu0 0
  %984 = vmatpush.bf16.msra.mxu0 0
  %985 = vmatpush.bf16.msra.mxu0 0
  %986 = vmatpush.bf16.msra.mxu0 0
  %987 = vmatpush.bf16.msra.mxu0 0
  %988 = vmatpush.bf16.msra.mxu0 %v950
  %989 = vmatmul.bf16.gmra.mxu0 %v941
  %v990 = vpop.f32.mrf.mxu0
  %v991 = vadd.f32 0.0, %v990
  %v992 = vpop.f32.mrf.mxu0
  %993 = vdwg.mxu0
  %994 = vmatpush.bf16.msra.mxu0 0
  %995 = vmatpush.bf16.msra.mxu0 0
  %996 = vmatpush.bf16.msra.mxu0 0
  %997 = vmatpush.bf16.msra.mxu0 0
  %998 = vmatpush.bf16.msra.mxu0 0
  %999 = vmatpush.bf16.msra.mxu0 0
  %1000 = vmatpush.bf16.msra.mxu0 0
  %1001 = vmatpush.bf16.msra.mxu0 %v953
  %1002 = vmatmul.bf16.gmra.mxu0 %v941
  %v1003 = vpop.f32.mrf.mxu0
  %v1004 = vadd.f32 0.0, %v1003
  %v1005 = vpop.f32.mrf.mxu0
  %1006 = vdwg.mxu0
  %v1007 = vadd.f32 %v901, %v965
  %v1008 = vadd.f32 %v902, %v978
  %v1009 = vadd.f32 %v903, %v991
  %v1010 = vadd.f32 %v904, %v1004
  %v1011 = vld [vmem:[%s2] sm:$0xff]
  %1013 = vset.pattern.permute.xlu0 0
  %1014 = vperm.xlu0 %1013, %v1011
  %v1015 = vpop.permute.xlu0 %1014
  %v1017 = vadd.f32 %v1007, %v1015
  %v1018 = vadd.f32 %v1008, %v1015
  %v1019 = vadd.f32 %v1009, %v1015
  %v1020 = vadd.f32 %v1010, %v1015
  %v1021 = vmax.f32 %v1017, 0.0
  %v1022 = vmax.f32 %v1018, 0.0
  %v1023 = vmax.f32 %v1019, 0.0
  %v1024 = vmax.f32 %v1020, 0.0
  %v1025 = vld [vmem:[%s1 + $0x48] sm:$0x7]
  %v1026 = vpack.c.bf16 %v1025, %v1025
  %v1027 = vld [vmem:[%s2 + $0x8] sm:$0x7]
  %v1028 = vpack.c.bf16 %v1021, %v1021
  %v1029 = vpack.c.bf16 %v1022, %v1022
  %v1030 = vpack.c.bf16 %v1023, %v1023
  %v1031 = vpack.c.bf16 %v1024, %v1024
  %1033 = vset.pattern.permute.xlu0 0
  %1034 = vperm.xlu0 %1033, %v1027
  %v1035 = vpop.permute.xlu0 %1034
  %v1038 = vsel %vm136, %v1026, 0
  %v1041 = vsel %vm140, %v1028, 0
  %v1044 = vsel %vm140, %v1029, 0
  %v1047 = vsel %vm140, %v1030, 0
  %v1050 = vsel %vm140, %v1031, 0
  %1052 = vmatpush.bf16.msra.mxu0 0
  %1053 = vmatpush.bf16.msra.mxu0 0
  %1054 = vmatpush.bf16.msra.mxu0 0
  %1055 = vmatpush.bf16.msra.mxu0 0
  %1056 = vmatpush.bf16.msra.mxu0 0
  %1057 = vmatpush.bf16.msra.mxu0 0
  %1058 = vmatpush.bf16.msra.mxu0 0
  %1059 = vmatpush.bf16.msra.mxu0 %v1041
  %1060 = vmatmul.bf16.gmra.mxu0 %v1038
  %v1061 = vpop.f32.mrf.mxu0
  %v1062 = vadd.f32 %v1035, %v1061
  %v1063 = vpop.f32.mrf.mxu0
  %1064 = vdwg.mxu0
  %1065 = vmatpush.bf16.msra.mxu0 0
  %1066 = vmatpush.bf16.msra.mxu0 0
  %1067 = vmatpush.bf16.msra.mxu0 0
  %1068 = vmatpush.bf16.msra.mxu0 0
  %1069 = vmatpush.bf16.msra.mxu0 0
  %1070 = vmatpush.bf16.msra.mxu0 0
  %1071 = vmatpush.bf16.msra.mxu0 0
  %1072 = vmatpush.bf16.msra.mxu0 %v1044
  %1073 = vmatmul.bf16.gmra.mxu0 %v1038
  %v1074 = vpop.f32.mrf.mxu0
  %v1075 = vadd.f32 %v1035, %v1074
  %v1076 = vpop.f32.mrf.mxu0
  %1077 = vdwg.mxu0
  %1078 = vmatpush.bf16.msra.mxu0 0
  %1079 = vmatpush.bf16.msra.mxu0 0
  %1080 = vmatpush.bf16.msra.mxu0 0
  %1081 = vmatpush.bf16.msra.mxu0 0
  %1082 = vmatpush.bf16.msra.mxu0 0
  %1083 = vmatpush.bf16.msra.mxu0 0
  %1084 = vmatpush.bf16.msra.mxu0 0
  %1085 = vmatpush.bf16.msra.mxu0 %v1047
  %1086 = vmatmul.bf16.gmra.mxu0 %v1038
  %v1087 = vpop.f32.mrf.mxu0
  %v1088 = vadd.f32 %v1035, %v1087
  %v1089 = vpop.f32.mrf.mxu0
  %1090 = vdwg.mxu0
  %1091 = vmatpush.bf16.msra.mxu0 0
  %1092 = vmatpush.bf16.msra.mxu0 0
  %1093 = vmatpush.bf16.msra.mxu0 0
  %1094 = vmatpush.bf16.msra.mxu0 0
  %1095 = vmatpush.bf16.msra.mxu0 0
  %1096 = vmatpush.bf16.msra.mxu0 0
  %1097 = vmatpush.bf16.msra.mxu0 0
  %1098 = vmatpush.bf16.msra.mxu0 %v1050
  %1099 = vmatmul.bf16.gmra.mxu0 %v1038
  %v1100 = vpop.f32.mrf.mxu0
  %v1101 = vadd.f32 %v1035, %v1100
  %v1102 = vpop.f32.mrf.mxu0
  %1103 = vdwg.mxu0
  %v1108 = vrot.slane %v1075, 4
  %v1109 = vrot.slane %v1101, 4
  %v1110 = vsel %vm140, %v1062, %v1108
  %v1111 = vsel %vm140, %v1088, %v1109
  %1114 = vst [vmem:[%s3] sm:$0x77] %v1110
  %1115 = vst [vmem:[%s3 + $0x8] sm:$0x77] %v1111
  // Predicated region
  $region14: #{out_block_pallas.1} parent=0 // pred_check
    _
  $region15: #{out_block_pallas.1} parent=0 // pred_check_branch
    %1117 = sbr.rel (0) target = $region17
  $region16: #{out_block_pallas.1} parent=0 // pred_region
    _
  $region17: #{out_block_pallas.1} parent=0 // pred_fallthru
    _
  // Predicated region
  $region18: #{out_block_pallas.1} parent=0 // pred_check
    _
  $region19: #{out_block_pallas.1} parent=0 // pred_check_branch
    %1119 = sbr.rel (0) target = $region21
  $region20: #{out_block_pallas.1} parent=0 // pred_region
    _
  $region21: #{out_block_pallas.1} parent=0 // pred_fallthru
    _

</llo_original>
